<compile_context>
chip_gen: v7x
topology: tpu7x:2x2x1
jax: 0.10.0
libtpu: 0.0.40
codegen_flags: <defaults>
</compile_context>

<pallas_src>
import math

import jax
import jax.numpy as jnp
from jax.experimental import pallas as pl
from jax.experimental.pallas import tpu as pltpu


def prefix_mlp_kernel(x_ref, w1_ref, b1_ref, w2_ref, b2_ref, out_ref):
    # ---- Linear 1 + Tanh (recomputed per output tile; x/w1/b1 are VMEM
    #      resident so this costs only MXU/EUP cycles hidden under w2 DMA) ----
    h = jnp.dot(x_ref[...], w1_ref[...], preferred_element_type=jnp.float32)
    h = h + b1_ref[...].astype(jnp.float32)
    # torch keeps the layer output in bf16 before Tanh -> round, then tanh
    h = jnp.tanh(h.astype(jnp.bfloat16).astype(jnp.float32)).astype(jnp.bfloat16)
    # ---- Linear 2 (this tile of the (mid, 2*L*n_embd) weight) ----
    o = jnp.dot(h, w2_ref[...], preferred_element_type=jnp.float32)
    o = o + b2_ref[...].astype(jnp.float32)
    out_ref[...] = o.astype(out_ref.dtype)


def _pick_tile_n(m, n_in, mid, out_dim, vmem_budget_bytes):
    """Largest lane-dense (multiple-of-128) output tile that fits the budget."""
    bpe = 2  # bf16 bytes
    # Resident inputs (x, w1, b1); count double-buffered as the worst case.
    resident = 2 * bpe * (m * n_in + n_in * mid + mid)
    avail = max(vmem_budget_bytes - resident, 2 * 1024 * 1024)
    # Per-output-column bytes: double-buffered w2 + b2 tiles, double-buffered
    # bf16 out tile, plus f32 temporaries for the accumulator rows.
    per_col = 2 * bpe * (mid + 1) + 2 * bpe * m + 4 * m
    tile = avail // per_col
    tile = (tile // 128) * 128
    tile = max(128, min(tile, 2048))
    if out_dim <= tile:
        return out_dim
    return int(tile)


def prefix_mlp(x, w1, b1, w2, b2, *, vmem_budget_bytes=40 * 1024 * 1024):
    """x: (M, n_embd) bf16 -> (M, 2*L*n_embd) bf16.

    The second-matmul output dimension is tiled with a grid so the w2 stream
    (the true bottleneck at realistic sizes) is double-buffered and overlapped
    with compute.  x, w1 and b1 keep a constant block index -> loaded once.
    """
    m, n_in = x.shape
    mid = w1.shape[1]
    out_dim = w2.shape[1]

    tile_n = _pick_tile_n(m, n_in, mid, out_dim, vmem_budget_bytes)
    grid_n = pl.cdiv(out_dim, tile_n)

    return pl.pallas_call(
        prefix_mlp_kernel,
        out_shape=jax.ShapeDtypeStruct((m, out_dim), jnp.bfloat16),
        grid_spec=pltpu.PrefetchScalarGridSpec(
            num_scalar_prefetch=0,
            grid=(grid_n,),
            in_specs=[
                pl.BlockSpec((m, n_in), lambda j: (0, 0)),      # x   (resident)
                pl.BlockSpec((n_in, mid), lambda j: (0, 0)),    # w1  (resident)
                pl.BlockSpec((1, mid), lambda j: (0, 0)),       # b1  (resident)
                pl.BlockSpec((mid, tile_n), lambda j: (0, j)),  # w2  (streamed)
                pl.BlockSpec((1, tile_n), lambda j: (0, j)),    # b2  (streamed)
            ],
            out_specs=pl.BlockSpec((m, tile_n), lambda j: (0, j)),
        ),
        compiler_params=pltpu.CompilerParams(
            # Independent N tiles -> shard across both TCs on v7x (no-op on
            # single-TC v5e/v6e).
            dimension_semantics=("parallel",),
            # Above the 16/32 MiB scoped defaults, below v7x's 64 MiB physical.
            vmem_limit_bytes=56 * 1024 * 1024,
        ),
    )(x, w1, b1, w2, b2)


class PrefixTuningPastKeyValuesJAX:
    """Deterministic JAX re-implementation of the PyTorch module."""

    def __init__(self, match_n_layer, match_n_head, n_embd, prefix_length=30,
                 key=jax.random.PRNGKey(0)):
        assert n_embd % match_n_head == 0
        self.prefix_length = prefix_length
        self.match_n_layer = match_n_layer
        self.match_n_head = match_n_head
        self.match_n_embd = n_embd // match_n_head
        self.n_embd = n_embd
        self.mid_dim = n_embd
        out_dim = match_n_layer * 2 * n_embd

        k_emb, k_w1, k_b1, k_w2, k_b2 = jax.random.split(key, 5)
        # nn.Embedding: N(0, 1) init
        self.prefix_embedding = jax.random.normal(
            k_emb, (prefix_length, n_embd), jnp.float32).astype(jnp.bfloat16)
        # nn.Linear: U(-1/sqrt(fan_in), 1/sqrt(fan_in)); weights stored (in, out)
        lim1 = 1.0 / math.sqrt(n_embd)
        self.w1 = jax.random.uniform(
            k_w1, (n_embd, self.mid_dim), jnp.float32, -lim1, lim1).astype(jnp.bfloat16)
        self.b1 = jax.random.uniform(
            k_b1, (1, self.mid_dim), jnp.float32, -lim1, lim1).astype(jnp.bfloat16)
        lim2 = 1.0 / math.sqrt(self.mid_dim)
        self.w2 = jax.random.uniform(
            k_w2, (self.mid_dim, out_dim), jnp.float32, -lim2, lim2).astype(jnp.bfloat16)
        self.b2 = jax.random.uniform(
            k_b2, (1, out_dim), jnp.float32, -lim2, lim2).astype(jnp.bfloat16)

    def forward(self, bsz):
        seqlen = self.prefix_length
        # Batch dedup: every batch row of the torch Embedding(arange) lookup is
        # the same table, so run the MLP ONCE on the table and broadcast the
        # result over batch afterwards.
        m_pad = -(-seqlen // 16) * 16          # bf16 sublane packing = 16 rows
        x = self.prefix_embedding
        if m_pad != seqlen:
            x = jnp.pad(x, ((0, m_pad - seqlen), (0, 0)))

        pkv2d = prefix_mlp(x, self.w1, self.b1, self.w2, self.b2)[:seqlen]

        pkv = pkv2d.reshape(seqlen, 2 * self.match_n_layer,
                            self.match_n_head, self.match_n_embd)
        # (seq, 2L, H, hd) -> (2L, H, seq, hd) -> insert+broadcast batch axis
        # == torch's view(bsz, seq, 2L, H, hd).permute(2, 0, 3, 1, 4)
        # TODO(synk): writing the final (2L, bsz, H, seq, hd) layout directly
        # from the kernel is only lane-dense when head_dim >= 128; with small
        # head_dim the 2-D slab + XLA transpose is kept.
        pkv = jnp.transpose(pkv, (1, 2, 0, 3))
        pkv = jnp.broadcast_to(
            pkv[:, None],
            (2 * self.match_n_layer, bsz, self.match_n_head,
             seqlen, self.match_n_embd))
        # split(2) along dim 0 -> L tuples of (key, value)
        past_key_values = tuple(
            (pkv[2 * l], pkv[2 * l + 1]) for l in range(self.match_n_layer))
        # NOTE: per-layer debug print intentionally omitted from the hot path.
        # TODO(synk): transformers.DynamicCache.from_legacy_cache has no JAX
        # equivalent; returning the legacy tuple-of-(key, value) instead.
        return past_key_values


if __name__ == "__main__":
    # Small shapes consistent with the module's forward.
    match_n_layer = 2
    match_n_head = 4
    n_embd = 32
    prefix_length = 8
    bsz = 2
    head_dim = n_embd // match_n_head

    module = PrefixTuningPastKeyValuesJAX(
        match_n_layer, match_n_head, n_embd, prefix_length=prefix_length,
        key=jax.random.PRNGKey(0))

    past_key_values = module.forward(bsz)
    jax.block_until_ready(past_key_values)

    # Shape / dtype sanity checks against the reference semantics.
    assert len(past_key_values) == match_n_layer
    for k, v in past_key_values:
        assert k.shape == (bsz, match_n_head, prefix_length, head_dim)
        assert v.shape == (bsz, match_n_head, prefix_length, head_dim)
        assert k.dtype == jnp.bfloat16 and v.dtype == jnp.bfloat16

    # Full numerical cross-check against a plain-JAX reference that follows the
    # original (broadcast-first) torch dataflow, verifying both the Pallas MLP
    # and the batch-dedup + layout glue.
    prefix_b = jnp.broadcast_to(
        module.prefix_embedding[None], (bsz, prefix_length, n_embd)
    ).reshape(bsz * prefix_length, n_embd)
    h_ref = jnp.tanh(
        (jnp.dot(prefix_b.astype(jnp.float32), module.w1.astype(jnp.float32))
         + module.b1.astype(jnp.float32)).astype(jnp.bfloat16).astype(jnp.float32))
    out_ref = (jnp.dot(h_ref.astype(jnp.bfloat16).astype(jnp.float32),
                       module.w2.astype(jnp.float32))
               + module.b2.astype(jnp.float32)).astype(jnp.bfloat16)
    pkv_ref = jnp.transpose(
        out_ref.reshape(bsz, prefix_length, 2 * match_n_layer,
                        match_n_head, head_dim),
        (2, 0, 3, 1, 4))
    for l, (k, v) in enumerate(past_key_values):
        assert jnp.allclose(k.astype(jnp.float32),
                            pkv_ref[2 * l].astype(jnp.float32),
                            atol=2e-2, rtol=2e-2)
        assert jnp.allclose(v.astype(jnp.float32),
                            pkv_ref[2 * l + 1].astype(jnp.float32),
                            atol=2e-2, rtol=2e-2)

    print("KERNEL_OK")
</pallas_src>

<mosaic_0001>
module attributes {stable_mosaic.version = 11 : i64} {
  func.func @prefix_mlp_kernel(%arg0: i32, %arg1: memref<16x32xbf16, #tpu.memory_space<vmem>>, %arg2: memref<32x32xbf16, #tpu.memory_space<vmem>>, %arg3: memref<1x32xbf16, #tpu.memory_space<vmem>>, %arg4: memref<32x128xbf16, #tpu.memory_space<vmem>>, %arg5: memref<1x128xbf16, #tpu.memory_space<vmem>>, %arg6: memref<16x128xbf16, #tpu.memory_space<vmem>>) attributes {dimension_semantics = [#tpu.dimension_semantics<parallel>], iteration_bounds = array<i64: 1>, scalar_prefetch = 0 : i64, scratch_operands = 0 : i64, tpu.core_type = #tpu.core_type<tc>, window_params = [{pipeline_mode = #tpu.pipeline_mode<synchronous>, transform_indices = @transform_0, window_bounds = array<i64: 16, 32>}, {pipeline_mode = #tpu.pipeline_mode<synchronous>, transform_indices = @transform_1, window_bounds = array<i64: 32, 32>}, {pipeline_mode = #tpu.pipeline_mode<synchronous>, transform_indices = @transform_2, window_bounds = array<i64: 1, 32>}, {transform_indices = @transform_3, window_bounds = array<i64: 32, 128>}, {transform_indices = @transform_4, window_bounds = array<i64: 1, 128>}, {transform_indices = @transform_5, window_bounds = array<i64: 16, 128>}]} {
    %c0 = arith.constant 0 : index
    %c0_0 = arith.constant 0 : index
    %0 = vector.load %arg1[%c0, %c0_0] : memref<16x32xbf16, #tpu.memory_space<vmem>>, vector<16x32xbf16>
    %c0_1 = arith.constant 0 : index
    %c0_2 = arith.constant 0 : index
    %1 = vector.load %arg2[%c0_1, %c0_2] : memref<32x32xbf16, #tpu.memory_space<vmem>>, vector<32x32xbf16>
    %cst = arith.constant dense<0.000000e+00> : vector<16x32xf32>
    %2 = tpu.matmul %0, %1, %cst {dimension_numbers = #tpu.dot_dimension_numbers<[1], [0], [0], [1], [0, 0, 1, 1], [], []>} : vector<16x32xbf16>, vector<32x32xbf16>, vector<16x32xf32> -> vector<16x32xf32>
    %c0_3 = arith.constant 0 : index
    %c0_4 = arith.constant 0 : index
    %3 = vector.load %arg3[%c0_3, %c0_4] : memref<1x32xbf16, #tpu.memory_space<vmem>>, vector<1x32xbf16>
    %4 = arith.extf %3 : vector<1x32xbf16> to vector<1x32xf32>
    %5 = vector.broadcast %4 : vector<1x32xf32> to vector<16x32xf32>
    %6 = arith.addf %2, %5 : vector<16x32xf32>
    %7 = arith.truncf %6 : vector<16x32xf32> to vector<16x32xbf16>
    %8 = arith.extf %7 : vector<16x32xbf16> to vector<16x32xf32>
    %9 = math.tanh %8 : vector<16x32xf32>
    %10 = arith.truncf %9 : vector<16x32xf32> to vector<16x32xbf16>
    %c0_5 = arith.constant 0 : index
    %c0_6 = arith.constant 0 : index
    %11 = vector.load %arg4[%c0_5, %c0_6] : memref<32x128xbf16, #tpu.memory_space<vmem>>, vector<32x128xbf16>
    %cst_7 = arith.constant dense<0.000000e+00> : vector<16x128xf32>
    %12 = tpu.matmul %10, %11, %cst_7 {dimension_numbers = #tpu.dot_dimension_numbers<[1], [0], [0], [1], [0, 0, 1, 1], [], []>} : vector<16x32xbf16>, vector<32x128xbf16>, vector<16x128xf32> -> vector<16x128xf32>
    %c0_8 = arith.constant 0 : index
    %c0_9 = arith.constant 0 : index
    %13 = vector.load %arg5[%c0_8, %c0_9] : memref<1x128xbf16, #tpu.memory_space<vmem>>, vector<1x128xbf16>
    %14 = arith.extf %13 : vector<1x128xbf16> to vector<1x128xf32>
    %15 = vector.broadcast %14 : vector<1x128xf32> to vector<16x128xf32>
    %16 = arith.addf %12, %15 : vector<16x128xf32>
    %17 = arith.truncf %16 : vector<16x128xf32> to vector<16x128xbf16>
    %c0_10 = arith.constant 0 : index
    %c0_11 = arith.constant 0 : index
    %18 = vector.load %arg6[%c0_10, %c0_11] : memref<16x128xbf16, #tpu.memory_space<vmem>>, vector<16x128xbf16>
    tpu.vector_store %arg6[%c0_10, %c0_11], %17 {strides = array<i32>} : memref<16x128xbf16, #tpu.memory_space<vmem>>, vector<16x128xbf16>,
    return
  }
  func.func @transform_0(%arg0: i32) -> (i32, i32) {
    %c0_i32 = arith.constant 0 : i32
    %c0_i32_0 = arith.constant 0 : i32
    %c0_i32_1 = arith.constant 0 : i32
    return %c0_i32, %c0_i32_0 : i32, i32
  }
  func.func @transform_1(%arg0: i32) -> (i32, i32) {
    %c0_i32 = arith.constant 0 : i32
    %c0_i32_0 = arith.constant 0 : i32
    %c0_i32_1 = arith.constant 0 : i32
    return %c0_i32, %c0_i32_0 : i32, i32
  }
  func.func @transform_2(%arg0: i32) -> (i32, i32) {
    %c0_i32 = arith.constant 0 : i32
    %c0_i32_0 = arith.constant 0 : i32
    %c0_i32_1 = arith.constant 0 : i32
    return %c0_i32, %c0_i32_0 : i32, i32
  }
  func.func @transform_3(%arg0: i32) -> (i32, i32) {
    %c0_i32 = arith.constant 0 : i32
    %c0_i32_0 = arith.constant 0 : i32
    return %c0_i32, %arg0 : i32, i32
  }
  func.func @transform_4(%arg0: i32) -> (i32, i32) {
    %c0_i32 = arith.constant 0 : i32
    %c0_i32_0 = arith.constant 0 : i32
    return %c0_i32, %arg0 : i32, i32
  }
  func.func @transform_5(%arg0: i32) -> (i32, i32) {
    %c0_i32 = arith.constant 0 : i32
    %c0_i32_0 = arith.constant 0 : i32
    return %c0_i32, %arg0 : i32, i32
  }
}

</mosaic_0001>

<llo_original>
// kernel: tpu_custom_call.1
$region0: #{tpu_custom_call.1}
  #allocation0 [shape = 'u32[]', space=smem, size = 0x4, offset = 0x4, fixed_abs, tag = 'smem constant byte address 0x4 - core index']
  #allocation1 [shape = 'u32[144,128]{1,0:T(1,128)}', space=vmem, size = 0x12000, scoped, tag = 'internal scratch']
  %s0 = inlined_call_operand.hbm [shape: bf16[16,32], index: 0, kind: input, shape index: {}]
  %s1 = inlined_call_operand.hbm [shape: bf16[32,32], index: 1, kind: input, shape index: {}]
  %s2 = inlined_call_operand.vmem [shape: bf16[1,32], index: 2, kind: input, shape index: {}]
  %s3 = inlined_call_operand.hbm [shape: bf16[32,128], index: 3, kind: input, shape index: {}]
  %s4 = inlined_call_operand.vmem [shape: bf16[1,128], index: 4, kind: input, shape index: {}]
  %s5 = inlined_call_operand.hbm [shape: bf16[16,128], index: 5, kind: output, shape index: {}]
  %s6 = sld [smem:[#allocation0]]
  $region42: #{tpu_custom_call.1} parent=0
    _
  %s8 = ssub.s32 1, %s6
  %s9 = scalar_select 0, %s8, %s6
  $region1: #{tpu_custom_call.1} parent=0
    #allocation2 [shape = 'u8[4096]{0}', space=vmem, size = 0x1000, scoped, tag = 'input window, operand 0, single buffered']
    #allocation3 [shape = 's32[1]{0}', space=sflag, size = 0x4, scoped, tag = 'scoped memory for tpu_custom_call.1']
    #allocation4 [shape = 's32[1]{0}', space=sflag, size = 0x4, scoped, tag = 'scoped memory for tpu_custom_call.1']
    #allocation5 [shape = 'u8[8192]{0}', space=vmem, size = 0x2000, scoped, tag = 'input window, operand 1, single buffered']
    #allocation6 [shape = 's32[1]{0}', space=sflag, size = 0x4, scoped, tag = 'scoped memory for tpu_custom_call.1']
    #allocation7 [shape = 'u8[8192]{0}', space=vmem, size = 0x2000, scoped, tag = 'input window, operand 3, single buffered']
    #allocation8 [shape = 'u8[4096]{0}', space=vmem, size = 0x1000, scoped, tag = 'output window, operand 0, single buffered']
    %10 = vsyncpa [#allocation3], 0
    %11 = vsyncpa [#allocation6], 0
    %12 = vsyncpa [#allocation4], 0
    // Predicated region
    $region2: #{tpu_custom_call.1} parent=1 // pred_check
      _
    $region3: #{tpu_custom_call.1} parent=1 // pred_check_branch
      %14 = sbr.rel (0) target = $region5
    $region4: #{tpu_custom_call.1} parent=1 // pred_region
      %s16 = ssub.s32 128, 128
      %17 = vsyncadd [#allocation3], %s16
      %s18 = sshll.u32 [#allocation2], 4
      %s19 = int_to_ptr.vmem [resolvable:$true] %s18
      %24 = dma.hbm_to_vmem [thread:$0]  %s0, 128, %s19, [#allocation3], 64, 64, 4
    $region5: #{tpu_custom_call.1} parent=1 // pred_fallthru
      _
    // Predicated region
    $region6: #{tpu_custom_call.1} parent=1 // pred_check
      _
    $region7: #{tpu_custom_call.1} parent=1 // pred_check_branch
      %26 = sbr.rel (0) target = $region9
    $region8: #{tpu_custom_call.1} parent=1 // pred_region
      %s28 = ssub.s32 256, 256
      %29 = vsyncadd [#allocation6], %s28
      %s30 = sshll.u32 [#allocation5], 4
      %s31 = int_to_ptr.vmem [resolvable:$true] %s30
      %36 = dma.hbm_to_vmem [thread:$0]  %s1, 256, %s31, [#allocation6], 64, 64, 4
    $region9: #{tpu_custom_call.1} parent=1 // pred_fallthru
      _
    // Predicated region
    $region10: #{tpu_custom_call.1} parent=1 // pred_check
      _
    $region11: #{tpu_custom_call.1} parent=1 // pred_check_branch
      %38 = sbr.rel (0) target = $region13
    $region12: #{tpu_custom_call.1} parent=1 // pred_region
      _
    $region13: #{tpu_custom_call.1} parent=1 // pred_fallthru
      _
    // Predicated region
    $region14: #{tpu_custom_call.1} parent=1 // pred_check
      _
    $region15: #{tpu_custom_call.1} parent=1 // pred_check_branch
      %40 = sbr.rel (0) target = $region17
    $region16: #{tpu_custom_call.1} parent=1 // pred_region
      %s42 = ssub.s32 256, 256
      %43 = vsyncadd [#allocation6], %s42
      %s44 = sshll.u32 [#allocation7], 4
      %s45 = int_to_ptr.vmem [resolvable:$true] %s44
      %50 = dma.hbm_to_vmem [thread:$0]  %s3, 256, %s45, [#allocation6], 64, 64, 4
    $region17: #{tpu_custom_call.1} parent=1 // pred_fallthru
      _
    // Predicated region
    $region18: #{tpu_custom_call.1} parent=1 // pred_check
      _
    $region19: #{tpu_custom_call.1} parent=1 // pred_check_branch
      %52 = sbr.rel (0) target = $region21
    $region20: #{tpu_custom_call.1} parent=1 // pred_region
      _
    $region21: #{tpu_custom_call.1} parent=1 // pred_fallthru
      _
    // Predicated region
    $region22: #{tpu_custom_call.1} parent=1 // pred_check
      _
    $region23: #{tpu_custom_call.1} parent=1 // pred_check_branch
      %54 = sbr.rel (0) target = $region25
    $region24: #{tpu_custom_call.1} parent=1 // pred_region
      %55 = dma.done [#allocation3], 128
    $region25: #{tpu_custom_call.1} parent=1 // pred_fallthru
      _
    // Predicated region
    $region26: #{tpu_custom_call.1} parent=1 // pred_check
      _
    $region27: #{tpu_custom_call.1} parent=1 // pred_check_branch
      %57 = sbr.rel (0) target = $region29
    $region28: #{tpu_custom_call.1} parent=1 // pred_region
      %58 = dma.done [#allocation6], 256
    $region29: #{tpu_custom_call.1} parent=1 // pred_fallthru
      _
    // Predicated region
    $region30: #{tpu_custom_call.1} parent=1 // pred_check
      _
    $region31: #{tpu_custom_call.1} parent=1 // pred_check_branch
      %60 = sbr.rel (0) target = $region33
    $region32: #{tpu_custom_call.1} parent=1 // pred_region
      %61 = dma.done [#allocation6], 256
    $region33: #{tpu_custom_call.1} parent=1 // pred_fallthru
      _
    %v63 = vld [vmem:[#allocation2] sm:$0xf]
    %v64 = vld [vmem:[#allocation2 + $0x4] sm:$0xf]
    %v65 = vld [vmem:[#allocation5] sm:$0xf]
    %v66 = vld [vmem:[#allocation5 + $0x4] sm:$0xf]
    %v67 = vld [vmem:[#allocation5 + $0x8] sm:$0xf]
    %v68 = vld [vmem:[#allocation5 + $0xc] sm:$0xf]
    %v69 = vld [vmem:[%s2] sm:$0x1]
    %v70 = vunpack.c.l.bf16 %v69
    %v71 = vlaneseq
    %v72 = vshrl.u32 %v71, 7
    %v73 = vsub.s32 0, %v72
    %v74 = vrot.slane %v70, %v73
    %v77 = vunpack.c.l.b16 %v63
    %v78 = vunpack.c.l.b16 %v64
    %v79 = vpack.c.b16 %v78, %v77
    %v84 = vunpack.c.l.b16 %v65
    %v85 = vunpack.c.l.b16 %v66
    %v86 = vunpack.c.l.b16 %v67
    %v87 = vunpack.c.l.b16 %v68
    %v88 = vpack.c.b16 %v85, %v84
    %v89 = vpack.c.b16 %v87, %v86
    %vm92 = vcmask 261120
    %v94 = vsel %vm92, %v79, 0
    %96 = vmatprep.subr.bf16.mxu0 0
    %97 = vmatpush1.bf16.msra.mxu0 %v88
    %98 = vmatprep.subr.bf16.mxu0 0
    %99 = vmatpush1.bf16.msra.mxu0 %v89
    %100 = vmatprep.subr.bf16.mxu0 0
    %101 = vmatpush1.bf16.msra.mxu0 0
    %102 = vmatprep.subr.bf16.mxu0 0
    %103 = vmatpush1.bf16.msra.mxu0 0
    %104 = vmatprep.subr.bf16.mxu0 0
    %105 = vmatpush1.bf16.msra.mxu0 0
    %106 = vmatprep.subr.bf16.mxu0 0
    %107 = vmatpush1.bf16.msra.mxu0 0
    %108 = vmatprep.subr.bf16.mxu0 0
    %109 = vmatpush1.bf16.msra.mxu0 0
    %110 = vmatprep.subr.bf16.mxu0 0
    %111 = vmatpush1.bf16.msra.mxu0 0
    %112 = vmatprep.subr.bf16.mxu0 0
    %113 = vmatpush1.bf16.msra.mxu0 0
    %114 = vmatprep.subr.bf16.mxu0 0
    %115 = vmatpush1.bf16.msra.mxu0 0
    %116 = vmatprep.subr.bf16.mxu0 0
    %117 = vmatpush1.bf16.msra.mxu0 0
    %118 = vmatprep.subr.bf16.mxu0 0
    %119 = vmatpush1.bf16.msra.mxu0 0
    %120 = vmatprep.subr.bf16.mxu0 0
    %121 = vmatpush1.bf16.msra.mxu0 0
    %122 = vmatprep.subr.bf16.mxu0 0
    %123 = vmatpush1.bf16.msra.mxu0 0
    %124 = vmatprep.subr.bf16.mxu0 0
    %125 = vmatpush1.bf16.msra.mxu0 0
    %126 = vmatprep.subr.bf16.mxu0 0
    %127 = vmatpush1.bf16.msra.mxu0 0
    %128 = vmatprep.mubr.bf16.mxu0 0
    %129 = vmatmul.mubr.bf16.gmra.mrb[0].mxu0 %v94
    %v130 = vpop.f32.mrb[0].mxu0
    %v131 = vadd.f32 %v74, %v130
    %v132 = vpop.f32.mrb[0].mxu0
    %v133 = vpop.f32.mrb[0].mxu0
    %v134 = vadd.f32 %v74, %v133
    %v135 = vpop.f32.mrb[0].mxu0
    %136 = vdwg.mxu0
    %v137 = vpack.c.bf16 %v134, %v131
    %v138 = vunpack.c.l.bf16 %v137
    %v139 = vunpack.c.h.bf16 %v137
    %v140 = vtanh.pop %v138
    %v141 = vtanh.pop %v139
    %v142 = vpack.c.bf16 %v141, %v140
    %v143 = vld [vmem:[#allocation7] sm:$0xf]
    %v144 = vld [vmem:[#allocation7 + $0x4] sm:$0xf]
    %v145 = vld [vmem:[#allocation7 + $0x8] sm:$0xf]
    %v146 = vld [vmem:[#allocation7 + $0xc] sm:$0xf]
    %v147 = vld [vmem:[%s4] sm:$0x1]
    %v148 = vunpack.c.l.bf16 %v147
    %v149 = vlaneseq
    %v150 = vshrl.u32 %v149, 7
    %v151 = vsub.s32 0, %v150
    %v152 = vrot.slane %v148, %v151
    %v157 = vunpack.c.l.b16 %v143
    %v158 = vunpack.c.l.b16 %v144
    %v159 = vunpack.c.l.b16 %v145
    %v160 = vunpack.c.l.b16 %v146
    %v161 = vpack.c.b16 %v158, %v157
    %v162 = vpack.c.b16 %v160, %v159
    %v166 = vsel %vm92, %v142, 0
    %168 = vmatprep.subr.bf16.mxu0 0
    %169 = vmatpush1.bf16.msra.mxu0 %v161
    %170 = vmatprep.subr.bf16.mxu0 0
    %171 = vmatpush1.bf16.msra.mxu0 %v162
    %172 = vmatprep.subr.bf16.mxu0 0
    %173 = vmatpush1.bf16.msra.mxu0 0
    %174 = vmatprep.subr.bf16.mxu0 0
    %175 = vmatpush1.bf16.msra.mxu0 0
    %176 = vmatprep.subr.bf16.mxu0 0
    %177 = vmatpush1.bf16.msra.mxu0 0
    %178 = vmatprep.subr.bf16.mxu0 0
    %179 = vmatpush1.bf16.msra.mxu0 0
    %180 = vmatprep.subr.bf16.mxu0 0
    %181 = vmatpush1.bf16.msra.mxu0 0
    %182 = vmatprep.subr.bf16.mxu0 0
    %183 = vmatpush1.bf16.msra.mxu0 0
    %184 = vmatprep.subr.bf16.mxu0 0
    %185 = vmatpush1.bf16.msra.mxu0 0
    %186 = vmatprep.subr.bf16.mxu0 0
    %187 = vmatpush1.bf16.msra.mxu0 0
    %188 = vmatprep.subr.bf16.mxu0 0
    %189 = vmatpush1.bf16.msra.mxu0 0
    %190 = vmatprep.subr.bf16.mxu0 0
    %191 = vmatpush1.bf16.msra.mxu0 0
    %192 = vmatprep.subr.bf16.mxu0 0
    %193 = vmatpush1.bf16.msra.mxu0 0
    %194 = vmatprep.subr.bf16.mxu0 0
    %195 = vmatpush1.bf16.msra.mxu0 0
    %196 = vmatprep.subr.bf16.mxu0 0
    %197 = vmatpush1.bf16.msra.mxu0 0
    %198 = vmatprep.subr.bf16.mxu0 0
    %199 = vmatpush1.bf16.msra.mxu0 0
    %200 = vmatprep.mubr.bf16.mxu0 0
    %201 = vmatmul.mubr.bf16.gmra.mrb[0].mxu0 %v166
    %v202 = vpop.f32.mrb[0].mxu0
    %v203 = vadd.f32 %v152, %v202
    %v204 = vpop.f32.mrb[0].mxu0
    %v205 = vpop.f32.mrb[0].mxu0
    %v206 = vadd.f32 %v152, %v205
    %v207 = vpop.f32.mrb[0].mxu0
    %208 = vdwg.mxu0
    %v209 = vpack.c.bf16 %v206, %v203
    %v211 = vunpack.c.l.b16 %v209
    %v212 = vunpack.c.h.b16 %v209
    %v213 = vpack.c.b16 %v211, %v211
    %v214 = vpack.c.b16 %v212, %v212
    %217 = vst [vmem:[#allocation8] sm:$0xf] %v213
    %218 = vst [vmem:[#allocation8 + $0x4] sm:$0xf] %v214
    // Predicated region
    $region34: #{tpu_custom_call.1} parent=1 // pred_check
      _
    $region35: #{tpu_custom_call.1} parent=1 // pred_check_branch
      %220 = sbr.rel (0) target = $region37
    $region36: #{tpu_custom_call.1} parent=1 // pred_region
      %s222 = ssub.s32 128, 128
      %223 = vsyncadd [#allocation4], %s222
      %s224 = sshll.u32 [#allocation8], 4
      %s225 = int_to_ptr.vmem [resolvable:$true] %s224
      %230 = dma.vmem_to_hbm [thread:$0]  %s225, 128, %s5, [#allocation4], 64, 64, 4
    $region37: #{tpu_custom_call.1} parent=1 // pred_fallthru
      _
    // Predicated region
    $region38: #{tpu_custom_call.1} parent=1 // pred_check
      _
    $region39: #{tpu_custom_call.1} parent=1 // pred_check_branch
      %232 = sbr.rel (0) target = $region41
    $region40: #{tpu_custom_call.1} parent=1 // pred_region
      %233 = dma.done [#allocation4], 128
    $region41: #{tpu_custom_call.1} parent=1 // pred_fallthru
      _
    %234 = vsyncpa [#allocation3], 1
    %235 = vsyncpa [#allocation6], 1
    %236 = vsyncpa [#allocation4], 1

</llo_original>
